<compile_context>
chip_gen: v7x
topology: tpu7x:2x2x1
jax: 0.10.0
libtpu: 0.0.40
codegen_flags: <defaults>
</compile_context>

<pallas_src>
import jax
import jax.numpy as jnp
from jax import lax
from jax.experimental import pallas as pl
from jax.experimental.pallas import tpu as pltpu

LN_EPS = 1e-5                       # nn.LayerNorm default
_INV_SQRT2 = 0.7071067811865476


def _round_up(a, b):
    return -(-a // b) * b


def _gelu_exact(h):
    return 0.5 * h * (1.0 + lax.erf(h * jnp.float32(_INV_SQRT2)))


def _make_kernel(*, boom_normalise, normalise, boom_dim):
    inv_boom = 1.0 / float(boom_dim)

    def kernel(*refs):
        it = iter(refs)
        x_ref = next(it)
        w1_ref = next(it)
        b1_ref = next(it)
        if boom_normalise:
            g1_ref = next(it)          # boom_norm gamma chunk  (1, boom_tile)
            gw_ref = next(it)          # g1 @ W2                (1, dim)
            bw_ref = next(it)          # be1 @ W2               (1, dim)
        w2_ref = next(it)
        b2_ref = next(it)
        if normalise:
            g2_ref = next(it)
            be2_ref = next(it)
        o_ref = next(it)
        acc_ref = next(it)             # f32 (row_tile, dim) accumulator
        if boom_normalise:
            s1_ref = next(it)          # f32 (row_tile, 1) running sum(h)
            s2_ref = next(it)          # f32 (row_tile, 1) running sum(h^2)

        k = pl.program_id(1)
        nk = pl.num_programs(1)

        @pl.when(k == 0)
        def _init():
            acc_ref[...] = jnp.zeros_like(acc_ref)
            if boom_normalise:
                s1_ref[...] = jnp.zeros_like(s1_ref)
                s2_ref[...] = jnp.zeros_like(s2_ref)

        # ---- boom_up chunk: h_k = gelu(x @ W1[:, k] + b1[k]); MXU in native dtype ----
        h = jnp.dot(x_ref[...], w1_ref[...], preferred_element_type=jnp.float32)
        h = _gelu_exact(h + b1_ref[...].astype(jnp.float32))

        if boom_normalise:
            # single-pass LayerNorm statistics over the boom axis
            s1_ref[...] += jnp.sum(h, axis=-1, keepdims=True)
            s2_ref[...] += jnp.sum(h * h, axis=-1, keepdims=True)
            h = h * g1_ref[...].astype(jnp.float32)

        # ---- boom_down chunk: accumulate (h_k [* g1_k]) @ W2[k] ----
        acc_ref[...] += jnp.dot(h.astype(w2_ref.dtype), w2_ref[...],
                                preferred_element_type=jnp.float32)

        @pl.when(k == nk - 1)
        def _finalize():
            x = x_ref[...].astype(jnp.float32)
            a = acc_ref[...]
            b2 = b2_ref[...].astype(jnp.float32)
            if boom_normalise:
                mu = s1_ref[...] * inv_boom
                var = s2_ref[...] * inv_boom - mu * mu
                rstd = lax.rsqrt(var + LN_EPS)
                y = (x + rstd * a
                     - (mu * rstd) * gw_ref[...].astype(jnp.float32)
                     + bw_ref[...].astype(jnp.float32) + b2)
            else:
                y = x + a + b2
            if normalise:
                mu2 = jnp.mean(y, axis=-1, keepdims=True)
                var2 = jnp.mean(jnp.square(y - mu2), axis=-1, keepdims=True)
                y = (y - mu2) * lax.rsqrt(var2 + LN_EPS)
                y = y * g2_ref[...].astype(jnp.float32) + be2_ref[...].astype(jnp.float32)
            o_ref[...] = y.astype(o_ref.dtype)

    return kernel


def boom_block(x, params, *, boom_normalise=True, normalise=False,
               row_tile=None, boom_tile=None):
    """x: (..., dim) -> (..., dim).  params: dict from init_params."""
    dim = x.shape[-1]
    w1, b1 = params["w1"], params["b1"]
    w2, b2 = params["w2"], params["b2"]
    boom_dim = w1.shape[1]
    orig_shape = x.shape

    if normalise:
        # TODO(synk): the PyTorch module's post-projection nn.LayerNorm(boom_dim) is only
        # well-defined when dim == boom_dim; we implement that path faithfully.
        assert dim == boom_dim, "normalise=True requires dim == boom_dim"

    x2 = x.reshape(-1, dim)
    n = x2.shape[0]

    # ---- tile selection (tunable: ~512-row tiles pay off on v6e's 128 MiB VMEM;
    #      keep 128-256 on v5e / v7x and let the parallel row axis use both v7x TCs) ----
    if row_tile is None:
        row_tile = min(256, _round_up(n, 8))
    if boom_tile is None:
        boom_tile = next((c for c in (512, 256, 128) if boom_dim % c == 0), boom_dim)
    assert boom_dim % boom_tile == 0, "boom_tile must divide boom_dim"

    # ---- cdiv-pad rows; zero-pad feature dim to a lane-dense multiple of 128
    #      (exact for matmul/residual; skipped when the post LayerNorm spans `dim`) ----
    n_pad = _round_up(n, row_tile)
    dim_p = _round_up(dim, 128) if (dim % 128 != 0 and not normalise) else dim
    dpad = dim_p - dim

    x2p = jnp.pad(x2, ((0, n_pad - n), (0, dpad))) if (n_pad != n or dpad) else x2
    w1p = jnp.pad(w1, ((0, dpad), (0, 0))) if dpad else w1
    w2p = jnp.pad(w2, ((0, 0), (0, dpad))) if dpad else w2
    b2p = jnp.pad(b2, ((0, 0), (0, dpad))) if dpad else b2

    grid = (n_pad // row_tile, boom_dim // boom_tile)

    in_specs = [
        pl.BlockSpec((row_tile, dim_p), lambda i, k: (i, 0)),      # x (resident across k)
        pl.BlockSpec((dim_p, boom_tile), lambda i, k: (0, k)),     # W1 chunk (streamed)
        pl.BlockSpec((1, boom_tile), lambda i, k: (0, k)),         # b1 chunk
    ]
    args = [x2p, w1p, b1]

    if boom_normalise:
        g1, be1 = params["g1"], params["be1"]
        # param-only constants folding gamma/beta of boom_norm through W2 (exact)
        gw = jnp.dot(g1.astype(jnp.float32), w2p.astype(jnp.float32))    # (1, dim_p)
        bw = jnp.dot(be1.astype(jnp.float32), w2p.astype(jnp.float32))   # (1, dim_p)
        in_specs += [
            pl.BlockSpec((1, boom_tile), lambda i, k: (0, k)),     # g1 chunk
            pl.BlockSpec((1, dim_p), lambda i, k: (0, 0)),         # gw
            pl.BlockSpec((1, dim_p), lambda i, k: (0, 0)),         # bw
        ]
        args += [g1, gw, bw]

    in_specs += [
        pl.BlockSpec((boom_tile, dim_p), lambda i, k: (k, 0)),     # W2 chunk (streamed)
        pl.BlockSpec((1, dim_p), lambda i, k: (0, 0)),             # b2
    ]
    args += [w2p, b2p]

    if normalise:
        in_specs += [
            pl.BlockSpec((1, dim_p), lambda i, k: (0, 0)),         # norm gamma
            pl.BlockSpec((1, dim_p), lambda i, k: (0, 0)),         # norm beta
        ]
        args += [params["g2"], params["be2"]]

    scratch = [pltpu.VMEM((row_tile, dim_p), jnp.float32)]         # y accumulator
    if boom_normalise:
        scratch += [pltpu.VMEM((row_tile, 1), jnp.float32),        # sum(h)
                    pltpu.VMEM((row_tile, 1), jnp.float32)]        # sum(h^2)

    # ---- explicit VMEM budget (double-buffered streams + scratch), with headroom ----
    xb = jnp.dtype(x.dtype).itemsize
    wb = jnp.dtype(w1.dtype).itemsize
    est = (4 * row_tile * dim_p * xb                    # x + out tiles, double-buffered
           + 4 * dim_p * boom_tile * wb                 # W1 + W2 chunks, double-buffered
           + 8 * boom_tile * wb + 16 * dim_p * 4        # bias / gamma / folded vectors
           + row_tile * dim_p * 4                       # acc scratch
           + 2 * row_tile * 128 * 4)                    # stat scratch (lane-padded)
    vmem_limit = int(min(max(2 * est, 8 * 2 ** 20), 64 * 2 ** 20))

    kernel = _make_kernel(boom_normalise=boom_normalise, normalise=normalise,
                          boom_dim=boom_dim)

    out = pl.pallas_call(
        kernel,
        out_shape=jax.ShapeDtypeStruct((n_pad, dim_p), x.dtype),
        grid_spec=pltpu.PrefetchScalarGridSpec(
            num_scalar_prefetch=0,
            grid=grid,
            in_specs=in_specs,
            out_specs=pl.BlockSpec((row_tile, dim_p), lambda i, k: (i, 0)),
            scratch_shapes=scratch,
        ),
        compiler_params=pltpu.CompilerParams(
            dimension_semantics=("parallel", "arbitrary"),
            vmem_limit_bytes=vmem_limit,
        ),
    )(*args)

    if n_pad != n or dpad:
        out = out[:n, :dim]
    return out.reshape(orig_shape)


def init_params(key, dim, boom_dim, dtype=jnp.float32):
    """Deterministic synthetic init matching the nn.Module's parameter shapes."""
    k1, k2, k3, k4 = jax.random.split(key, 4)
    lim1 = 1.0 / jnp.sqrt(dim)
    lim2 = 1.0 / jnp.sqrt(boom_dim)
    return {
        # nn.Linear(dim, boom_dim): weight stored transposed -> (dim, boom_dim)
        "w1": jax.random.uniform(k1, (dim, boom_dim), dtype, -lim1, lim1),
        "b1": jax.random.uniform(k2, (1, boom_dim), dtype, -lim1, lim1),
        # nn.LayerNorm(boom_dim)
        "g1": jnp.ones((1, boom_dim), dtype),
        "be1": jnp.zeros((1, boom_dim), dtype),
        # nn.Linear(boom_dim, dim)
        "w2": jax.random.uniform(k3, (boom_dim, dim), dtype, -lim2, lim2),
        "b2": jax.random.uniform(k4, (1, dim), dtype, -lim2, lim2),
        # post-projection nn.LayerNorm(boom_dim) (usable only when dim == boom_dim)
        "g2": jnp.ones((1, boom_dim), dtype),
        "be2": jnp.zeros((1, boom_dim), dtype),
    }


def _reference(x, p, boom_normalise=True, normalise=False):
    """Pure-JAX reference mirroring the PyTorch forward (eval mode, p=0 dropout)."""
    h = x @ p["w1"] + p["b1"]
    h = 0.5 * h * (1.0 + lax.erf(h * _INV_SQRT2))
    if boom_normalise:
        mu = h.mean(-1, keepdims=True)
        var = ((h - mu) ** 2).mean(-1, keepdims=True)
        h = (h - mu) / jnp.sqrt(var + LN_EPS) * p["g1"] + p["be1"]
    y = x + h @ p["w2"] + p["b2"]
    if normalise:
        mu = y.mean(-1, keepdims=True)
        var = ((y - mu) ** 2).mean(-1, keepdims=True)
        y = (y - mu) / jnp.sqrt(var + LN_EPS) * p["g2"] + p["be2"]
    return y


if __name__ == "__main__":
    # Small shapes: batch=2, seq=8, dim=32, boom_dim=256
    batch, seq, dim, boom_dim = 2, 8, 32, 256
    key = jax.random.PRNGKey(0)
    kx, kp = jax.random.split(key)

    x = jax.random.normal(kx, (batch, seq, dim), jnp.float32)
    params = init_params(kp, dim, boom_dim, jnp.float32)

    # 1) f32, small explicit tiles to exercise row tiling + boom-axis accumulation.
    out = boom_block(x, params, boom_normalise=True, normalise=False,
                     row_tile=8, boom_tile=128)
    out = jax.block_until_ready(out)
    ref = _reference(x, params, boom_normalise=True, normalise=False)
    assert out.shape == x.shape
    assert jnp.allclose(out, ref, atol=1e-4, rtol=1e-4), "f32 mismatch vs reference"

    # 2) ragged row count + non-multiple-of-128 feature dim (exercise padding paths).
    x_odd = jax.random.normal(kx, (batch, 5, dim), jnp.float32)
    out2 = jax.block_until_ready(
        boom_block(x_odd, params, boom_normalise=False, normalise=False))
    ref2 = _reference(x_odd, params, boom_normalise=False, normalise=False)
    assert out2.shape == x_odd.shape
    assert jnp.allclose(out2, ref2, atol=1e-4, rtol=1e-4), "padded-path mismatch"

    # 3) bf16 params + inputs fed natively to the MXU (f32 accumulation in-kernel).
    xb = x.astype(jnp.bfloat16)
    pb = {k: v.astype(jnp.bfloat16) for k, v in params.items()}
    out3 = jax.block_until_ready(
        boom_block(xb, pb, boom_normalise=True, normalise=False))
    assert out3.shape == x.shape
    assert jnp.allclose(out3.astype(jnp.float32), ref, atol=0.1, rtol=0.1), "bf16 mismatch"

    print("KERNEL_OK")
</pallas_src>

<mosaic_0001>
module attributes {stable_mosaic.version = 11 : i64} {
  func.func @kernel(%arg0: i32, %arg1: i32, %arg2: memref<8x128xf32, #tpu.memory_space<vmem>>, %arg3: memref<128x128xf32, #tpu.memory_space<vmem>>, %arg4: memref<1x128xf32, #tpu.memory_space<vmem>>, %arg5: memref<1x128xf32, #tpu.memory_space<vmem>>, %arg6: memref<1x128xf32, #tpu.memory_space<vmem>>, %arg7: memref<1x128xf32, #tpu.memory_space<vmem>>, %arg8: memref<128x128xf32, #tpu.memory_space<vmem>>, %arg9: memref<1x128xf32, #tpu.memory_space<vmem>>, %arg10: memref<8x128xf32, #tpu.memory_space<vmem>>, %arg11: memref<8x128xf32, #tpu.memory_space<vmem>>, %arg12: memref<8x1xf32, #tpu.memory_space<vmem>>, %arg13: memref<8x1xf32, #tpu.memory_space<vmem>>) attributes {dimension_semantics = [#tpu.dimension_semantics<parallel>, #tpu.dimension_semantics<arbitrary>], iteration_bounds = array<i64: 2, 2>, scalar_prefetch = 0 : i64, scratch_operands = 3 : i64, tpu.core_type = #tpu.core_type<tc>, window_params = [{transform_indices = @transform_0, window_bounds = array<i64: 8, 128>}, {transform_indices = @transform_1, window_bounds = array<i64: 128, 128>}, {transform_indices = @transform_2, window_bounds = array<i64: 1, 128>}, {transform_indices = @transform_3, window_bounds = array<i64: 1, 128>}, {pipeline_mode = #tpu.pipeline_mode<synchronous>, transform_indices = @transform_4, window_bounds = array<i64: 1, 128>}, {pipeline_mode = #tpu.pipeline_mode<synchronous>, transform_indices = @transform_5, window_bounds = array<i64: 1, 128>}, {transform_indices = @transform_6, window_bounds = array<i64: 128, 128>}, {pipeline_mode = #tpu.pipeline_mode<synchronous>, transform_indices = @transform_7, window_bounds = array<i64: 1, 128>}, {transform_indices = @transform_8, window_bounds = array<i64: 8, 128>}]} {
    %c0_i32 = arith.constant 0 : i32
    %0 = arith.cmpi eq, %arg1, %c0_i32 : i32
    %1 = arith.extui %0 : i1 to i32
    %c0_i32_0 = arith.constant 0 : i32
    %2 = arith.cmpi ne, %1, %c0_i32_0 : i32
    scf.if %2 {
      %cst_29 = arith.constant 0.000000e+00 : f32
      %39 = vector.broadcast %cst_29 : f32 to vector<8x128xf32>
      %c0_30 = arith.constant 0 : index
      %c0_31 = arith.constant 0 : index
      %40 = vector.load %arg11[%c0_30, %c0_31] : memref<8x128xf32, #tpu.memory_space<vmem>>, vector<8x128xf32>
      tpu.vector_store %arg11[%c0_30, %c0_31], %39 {strides = array<i32>} : memref<8x128xf32, #tpu.memory_space<vmem>>, vector<8x128xf32>,
      %cst_32 = arith.constant 0.000000e+00 : f32
      %41 = vector.broadcast %cst_32 : f32 to vector<8x1xf32>
      %c0_33 = arith.constant 0 : index
      %c0_34 = arith.constant 0 : index
      %42 = vector.load %arg12[%c0_33, %c0_34] : memref<8x1xf32, #tpu.memory_space<vmem>>, vector<8x1xf32>
      tpu.vector_store %arg12[%c0_33, %c0_34], %41 {strides = array<i32>} : memref<8x1xf32, #tpu.memory_space<vmem>>, vector<8x1xf32>,
      %cst_35 = arith.constant 0.000000e+00 : f32
      %43 = vector.broadcast %cst_35 : f32 to vector<8x1xf32>
      %c0_36 = arith.constant 0 : index
      %c0_37 = arith.constant 0 : index
      %44 = vector.load %arg13[%c0_36, %c0_37] : memref<8x1xf32, #tpu.memory_space<vmem>>, vector<8x1xf32>
      tpu.vector_store %arg13[%c0_36, %c0_37], %43 {strides = array<i32>} : memref<8x1xf32, #tpu.memory_space<vmem>>, vector<8x1xf32>,
    } else {
    }
    %c0 = arith.constant 0 : index
    %c0_1 = arith.constant 0 : index
    %3 = vector.load %arg2[%c0, %c0_1] : memref<8x128xf32, #tpu.memory_space<vmem>>, vector<8x128xf32>
    %c0_2 = arith.constant 0 : index
    %c0_3 = arith.constant 0 : index
    %4 = vector.load %arg3[%c0_2, %c0_3] : memref<128x128xf32, #tpu.memory_space<vmem>>, vector<128x128xf32>
    %cst = arith.constant dense<0.000000e+00> : vector<8x128xf32>
    %5 = tpu.matmul %3, %4, %cst {dimension_numbers = #tpu.dot_dimension_numbers<[1], [0], [0], [1], [0, 0, 1, 1], [], []>} : vector<8x128xf32>, vector<128x128xf32>, vector<8x128xf32> -> vector<8x128xf32>
    %c0_4 = arith.constant 0 : index
    %c0_5 = arith.constant 0 : index
    %6 = vector.load %arg4[%c0_4, %c0_5] : memref<1x128xf32, #tpu.memory_space<vmem>>, vector<1x128xf32>
    %7 = vector.broadcast %6 : vector<1x128xf32> to vector<8x128xf32>
    %8 = arith.addf %5, %7 : vector<8x128xf32>
    %cst_6 = arith.constant 5.000000e-01 : f32
    %9 = vector.broadcast %cst_6 : f32 to vector<8x128xf32>
    %10 = arith.mulf %9, %8 : vector<8x128xf32>
    %cst_7 = arith.constant 0.707106769 : f32
    %11 = vector.broadcast %cst_7 : f32 to vector<8x128xf32>
    %12 = arith.mulf %8, %11 : vector<8x128xf32>
    %13 = math.erf %12 : vector<8x128xf32>
    %cst_8 = arith.constant 1.000000e+00 : f32
    %14 = vector.broadcast %cst_8 : f32 to vector<8x128xf32>
    %15 = arith.addf %14, %13 : vector<8x128xf32>
    %16 = arith.mulf %10, %15 : vector<8x128xf32>
    %c0_9 = arith.constant 0 : index
    %c0_10 = arith.constant 0 : index
    %17 = vector.load %arg12[%c0_9, %c0_10] : memref<8x1xf32, #tpu.memory_space<vmem>>, vector<8x1xf32>
    %cst_11 = arith.constant dense<0.000000e+00> : vector<8xf32>
    %18 = vector.multi_reduction <add>, %16, %cst_11 [1] : vector<8x128xf32> to vector<8xf32>
    %19 = vector.shape_cast %18 : vector<8xf32> to vector<8x1xf32>
    %20 = arith.addf %17, %19 : vector<8x1xf32>
    %c0_12 = arith.constant 0 : index
    %c0_13 = arith.constant 0 : index
    %21 = vector.load %arg12[%c0_12, %c0_13] : memref<8x1xf32, #tpu.memory_space<vmem>>, vector<8x1xf32>
    tpu.vector_store %arg12[%c0_12, %c0_13], %20 {strides = array<i32>} : memref<8x1xf32, #tpu.memory_space<vmem>>, vector<8x1xf32>,
    %c0_14 = arith.constant 0 : index
    %c0_15 = arith.constant 0 : index
    %22 = vector.load %arg13[%c0_14, %c0_15] : memref<8x1xf32, #tpu.memory_space<vmem>>, vector<8x1xf32>
    %23 = arith.mulf %16, %16 : vector<8x128xf32>
    %cst_16 = arith.constant dense<0.000000e+00> : vector<8xf32>
    %24 = vector.multi_reduction <add>, %23, %cst_16 [1] : vector<8x128xf32> to vector<8xf32>
    %25 = vector.shape_cast %24 : vector<8xf32> to vector<8x1xf32>
    %26 = arith.addf %22, %25 : vector<8x1xf32>
    %c0_17 = arith.constant 0 : index
    %c0_18 = arith.constant 0 : index
    %27 = vector.load %arg13[%c0_17, %c0_18] : memref<8x1xf32, #tpu.memory_space<vmem>>, vector<8x1xf32>
    tpu.vector_store %arg13[%c0_17, %c0_18], %26 {strides = array<i32>} : memref<8x1xf32, #tpu.memory_space<vmem>>, vector<8x1xf32>,
    %c0_19 = arith.constant 0 : index
    %c0_20 = arith.constant 0 : index
    %28 = vector.load %arg5[%c0_19, %c0_20] : memref<1x128xf32, #tpu.memory_space<vmem>>, vector<1x128xf32>
    %29 = vector.broadcast %28 : vector<1x128xf32> to vector<8x128xf32>
    %30 = arith.mulf %16, %29 : vector<8x128xf32>
    %c0_21 = arith.constant 0 : index
    %c0_22 = arith.constant 0 : index
    %31 = vector.load %arg11[%c0_21, %c0_22] : memref<8x128xf32, #tpu.memory_space<vmem>>, vector<8x128xf32>
    %c0_23 = arith.constant 0 : index
    %c0_24 = arith.constant 0 : index
    %32 = vector.load %arg8[%c0_23, %c0_24] : memref<128x128xf32, #tpu.memory_space<vmem>>, vector<128x128xf32>
    %cst_25 = arith.constant dense<0.000000e+00> : vector<8x128xf32>
    %33 = tpu.matmul %30, %32, %cst_25 {dimension_numbers = #tpu.dot_dimension_numbers<[1], [0], [0], [1], [0, 0, 1, 1], [], []>} : vector<8x128xf32>, vector<128x128xf32>, vector<8x128xf32> -> vector<8x128xf32>
    %34 = arith.addf %31, %33 : vector<8x128xf32>
    %c0_26 = arith.constant 0 : index
    %c0_27 = arith.constant 0 : index
    %35 = vector.load %arg11[%c0_26, %c0_27] : memref<8x128xf32, #tpu.memory_space<vmem>>, vector<8x128xf32>
    tpu.vector_store %arg11[%c0_26, %c0_27], %34 {strides = array<i32>} : memref<8x128xf32, #tpu.memory_space<vmem>>, vector<8x128xf32>,
    %c1_i32 = arith.constant 1 : i32
    %36 = arith.cmpi eq, %arg1, %c1_i32 : i32
    %37 = arith.extui %36 : i1 to i32
    %c0_i32_28 = arith.constant 0 : i32
    %38 = arith.cmpi ne, %37, %c0_i32_28 : i32
    scf.if %38 {
      %c0_29 = arith.constant 0 : index
      %c0_30 = arith.constant 0 : index
      %39 = vector.load %arg2[%c0_29, %c0_30] : memref<8x128xf32, #tpu.memory_space<vmem>>, vector<8x128xf32>
      %c0_31 = arith.constant 0 : index
      %c0_32 = arith.constant 0 : index
      %40 = vector.load %arg11[%c0_31, %c0_32] : memref<8x128xf32, #tpu.memory_space<vmem>>, vector<8x128xf32>
      %c0_33 = arith.constant 0 : index
      %c0_34 = arith.constant 0 : index
      %41 = vector.load %arg9[%c0_33, %c0_34] : memref<1x128xf32, #tpu.memory_space<vmem>>, vector<1x128xf32>
      %c0_35 = arith.constant 0 : index
      %c0_36 = arith.constant 0 : index
      %42 = vector.load %arg12[%c0_35, %c0_36] : memref<8x1xf32, #tpu.memory_space<vmem>>, vector<8x1xf32>
      %cst_37 = arith.constant 3.906250e-03 : f32
      %43 = vector.broadcast %cst_37 : f32 to vector<8x1xf32>
      %44 = arith.mulf %42, %43 : vector<8x1xf32>
      %c0_38 = arith.constant 0 : index
      %c0_39 = arith.constant 0 : index
      %45 = vector.load %arg13[%c0_38, %c0_39] : memref<8x1xf32, #tpu.memory_space<vmem>>, vector<8x1xf32>
      %cst_40 = arith.constant 3.906250e-03 : f32
      %46 = vector.broadcast %cst_40 : f32 to vector<8x1xf32>
      %47 = arith.mulf %45, %46 : vector<8x1xf32>
      %48 = arith.mulf %44, %44 : vector<8x1xf32>
      %49 = arith.subf %47, %48 : vector<8x1xf32>
      %cst_41 = arith.constant 9.99999974E-6 : f32
      %50 = vector.broadcast %cst_41 : f32 to vector<8x1xf32>
      %51 = arith.addf %49, %50 : vector<8x1xf32>
      %52 = math.rsqrt %51 : vector<8x1xf32>
      %53 = vector.broadcast %52 : vector<8x1xf32> to vector<8x128xf32>
      %54 = arith.mulf %53, %40 : vector<8x128xf32>
      %55 = arith.addf %39, %54 : vector<8x128xf32>
      %56 = arith.mulf %44, %52 : vector<8x1xf32>
      %c0_42 = arith.constant 0 : index
      %c0_43 = arith.constant 0 : index
      %57 = vector.load %arg6[%c0_42, %c0_43] : memref<1x128xf32, #tpu.memory_space<vmem>>, vector<1x128xf32>
      %58 = vector.broadcast %56 : vector<8x1xf32> to vector<8x128xf32>
      %59 = vector.broadcast %57 : vector<1x128xf32> to vector<8x128xf32>
      %60 = arith.mulf %58, %59 : vector<8x128xf32>
      %61 = arith.subf %55, %60 : vector<8x128xf32>
      %c0_44 = arith.constant 0 : index
      %c0_45 = arith.constant 0 : index
      %62 = vector.load %arg7[%c0_44, %c0_45] : memref<1x128xf32, #tpu.memory_space<vmem>>, vector<1x128xf32>
      %63 = vector.broadcast %62 : vector<1x128xf32> to vector<8x128xf32>
      %64 = arith.addf %61, %63 : vector<8x128xf32>
      %65 = vector.broadcast %41 : vector<1x128xf32> to vector<8x128xf32>
      %66 = arith.addf %64, %65 : vector<8x128xf32>
      %c0_46 = arith.constant 0 : index
      %c0_47 = arith.constant 0 : index
      %67 = vector.load %arg10[%c0_46, %c0_47] : memref<8x128xf32, #tpu.memory_space<vmem>>, vector<8x128xf32>
      tpu.vector_store %arg10[%c0_46, %c0_47], %66 {strides = array<i32>} : memref<8x128xf32, #tpu.memory_space<vmem>>, vector<8x128xf32>,
    } else {
    }
    return
  }
  func.func @transform_0(%arg0: i32, %arg1: i32) -> (i32, i32) {
    %c0_i32 = arith.constant 0 : i32
    %c0_i32_0 = arith.constant 0 : i32
    return %arg0, %c0_i32 : i32, i32
  }
  func.func @transform_1(%arg0: i32, %arg1: i32) -> (i32, i32) {
    %c0_i32 = arith.constant 0 : i32
    %c0_i32_0 = arith.constant 0 : i32
    return %c0_i32, %arg1 : i32, i32
  }
  func.func @transform_2(%arg0: i32, %arg1: i32) -> (i32, i32) {
    %c0_i32 = arith.constant 0 : i32
    %c0_i32_0 = arith.constant 0 : i32
    return %c0_i32, %arg1 : i32, i32
  }
  func.func @transform_3(%arg0: i32, %arg1: i32) -> (i32, i32) {
    %c0_i32 = arith.constant 0 : i32
    %c0_i32_0 = arith.constant 0 : i32
    return %c0_i32, %arg1 : i32, i32
  }
  func.func @transform_4(%arg0: i32, %arg1: i32) -> (i32, i32) {
    %c0_i32 = arith.constant 0 : i32
    %c0_i32_0 = arith.constant 0 : i32
    %c0_i32_1 = arith.constant 0 : i32
    return %c0_i32, %c0_i32_0 : i32, i32
  }
  func.func @transform_5(%arg0: i32, %arg1: i32) -> (i32, i32) {
    %c0_i32 = arith.constant 0 : i32
    %c0_i32_0 = arith.constant 0 : i32
    %c0_i32_1 = arith.constant 0 : i32
    return %c0_i32, %c0_i32_0 : i32, i32
  }
  func.func @transform_6(%arg0: i32, %arg1: i32) -> (i32, i32) {
    %c0_i32 = arith.constant 0 : i32
    %c0_i32_0 = arith.constant 0 : i32
    return %arg1, %c0_i32 : i32, i32
  }
  func.func @transform_7(%arg0: i32, %arg1: i32) -> (i32, i32) {
    %c0_i32 = arith.constant 0 : i32
    %c0_i32_0 = arith.constant 0 : i32
    %c0_i32_1 = arith.constant 0 : i32
    return %c0_i32, %c0_i32_0 : i32, i32
  }
  func.func @transform_8(%arg0: i32, %arg1: i32) -> (i32, i32) {
    %c0_i32 = arith.constant 0 : i32
    %c0_i32_0 = arith.constant 0 : i32
    return %arg0, %c0_i32 : i32, i32
  }
}

</mosaic_0001>

<llo_original>
// kernel: tpu_custom_call.1
$region0: #{tpu_custom_call.1}
  #allocation0 [shape = 'u32[]', space=smem, size = 0x4, offset = 0x4, fixed_abs, tag = 'smem constant byte address 0x4 - core index']
  #allocation1 [shape = 'u32[144,128]{1,0:T(1,128)}', space=vmem, size = 0x12000, scoped, tag = 'internal scratch']
  #allocation2 [shape = 'f32[8,128]{1,0:T(8,128)}', space=vmem, size = 0x1000, scoped, tag = 'scratch operand']
  #allocation3 [shape = 'f32[8,1]{1,0:T(8,128)}', space=vmem, size = 0x1000, scoped, tag = 'scratch operand']
  #allocation4 [shape = 'f32[8,1]{1,0:T(8,128)}', space=vmem, size = 0x1000, scoped, tag = 'scratch operand']
  %s0 = inlined_call_operand.hbm [shape: f32[16,128], index: 0, kind: input, shape index: {}]
  %s1 = inlined_call_operand.hbm [shape: f32[128,256], index: 1, kind: input, shape index: {}]
  %s2 = inlined_call_operand.vmem [shape: f32[1,256], index: 2, kind: input, shape index: {}]
  %s3 = inlined_call_operand.vmem [shape: f32[1,256], index: 3, kind: input, shape index: {}]
  %s4 = inlined_call_operand.vmem [shape: f32[1,128], index: 4, kind: input, shape index: {}]
  %s5 = inlined_call_operand.vmem [shape: f32[1,128], index: 5, kind: input, shape index: {}]
  %s6 = inlined_call_operand.hbm [shape: f32[256,128], index: 6, kind: input, shape index: {}]
  %s7 = inlined_call_operand.vmem [shape: f32[1,128], index: 7, kind: input, shape index: {}]
  %s8 = inlined_call_operand.hbm [shape: f32[16,128], index: 8, kind: output, shape index: {}]
  %s9 = sld [smem:[#allocation0]]
  $region85: #{tpu_custom_call.1} parent=0
    _
  %s11 = ssub.s32 1, %s9
  %s12 = scalar_select 0, %s11, %s9
  $region1: #{tpu_custom_call.1} parent=0
    #allocation5 [shape = 'u8[8192]{0}', space=vmem, size = 0x2000, scoped, tag = 'input window, operand 0']
    #allocation6 [shape = 's32[2]{0}', space=sflag, size = 0x8, scoped, tag = 'scoped memory for tpu_custom_call.1']
    #allocation7 [shape = 's32[2]{0}', space=sflag, size = 0x8, scoped, tag = 'scoped memory for tpu_custom_call.1']
    #allocation8 [shape = 'u8[131072]{0}', space=vmem, size = 0x20000, scoped, tag = 'input window, operand 1']
    #allocation9 [shape = 's32[2]{0}', space=sflag, size = 0x8, scoped, tag = 'scoped memory for tpu_custom_call.1']
    #allocation10 [shape = 'u8[131072]{0}', space=vmem, size = 0x20000, scoped, tag = 'input window, operand 6']
    #allocation11 [shape = 'u8[8192]{0}', space=vmem, size = 0x2000, scoped, tag = 'output window, operand 0']
    %13 = vsyncpa [#allocation6], 0
    %s14 = scalar_lea.sflag [#allocation6], 1
    %15 = vsyncpa %s14, 0
    %16 = vsyncpa [#allocation9], 0
    %s17 = scalar_lea.sflag [#allocation9], 1
    %18 = vsyncpa %s17, 0
    %19 = vsyncpa [#allocation7], 0
    %s20 = scalar_lea.sflag [#allocation7], 1
    %21 = vsyncpa %s20, 0
    loop: start=0, step=1, limit=6
    $region2: #{tpu_custom_call.1} parent=1 // loop_pre_header
      _
    $region3: #{tpu_custom_call.1} parent=1 // loop_header
      %s23 = sphi 0, %s27
      %p24 = scmp.ge.s32.totalorder %s23, 6
      %s30 = sphi 0, %s42
      %s31 = sphi 0, %s38
      %s32 = sphi 0, %s30
      %s33 = sphi 0, %s31
      %s34 = sphi 0, %s32
      %s35 = sphi 0, %s33
      %s45 = sphi 0, %s47
      %s48 = sphi 0, %s45
      %s49 = sphi 0, %s48
      %s65 = sphi 0, %s49
      %s71 = sphi 0, %s73
      %s74 = sphi 0, %s71
      %s75 = sphi 0, %s74
      %s91 = sphi 0, %s75
      %s97 = sphi 0, %s99
      %s100 = sphi 0, %s97
      %s101 = sphi 0, %s100
      %s117 = sphi 0, %s101
      %s123 = sphi 0, %s125
      %s126 = sphi 0, %s123
      %s127 = sphi 0, %s126
      %s143 = sphi 0, %s127
      %s147 = sphi 0, %s147
      %s149 = sphi 0, %s147
      %s150 = sphi 0, %s149
      %s164 = sphi 0, %s150
      %s168 = sphi 0, %s168
      %s170 = sphi 0, %s168
      %s171 = sphi 0, %s170
      %s185 = sphi 0, %s171
      %s191 = sphi 0, %s193
      %s194 = sphi 0, %s191
      %s195 = sphi 0, %s194
      %s211 = sphi 0, %s195
      %s215 = sphi 0, %s215
      %s217 = sphi 0, %s215
      %s218 = sphi 0, %s217
      %s232 = sphi 0, %s218
      %s238 = sphi 0, %s240
      %s241 = sphi 0, %s238
      %s242 = sphi 0, %s241
      %s258 = sphi 0, %s242
    $region4: #{tpu_custom_call.1} parent=1 // loop_header_branch
      %26 = sbr.rel (%p24) target = $region8
    $region5: #{tpu_custom_call.1} parent=1 // loop_body
      %s28 = ssub.s32 %s23, 1
      %s29 = ssub.s32 %s23, 2
      %s36 = sadd.s32 1, %s31
      %p37 = scmp.ge.s32.totalorder %s36, 2
      %s38 = scalar_select %p37, 0, %s36
      %s39 = sadd.s32 1, %s30
      %s40 = scalar_select %p37, %s39, %s30
      %p41 = scmp.ge.s32.totalorder %s40, 2
      %s42 = scalar_select %p41, 0, %s40
      %s43 = ssub.s32 %s30, %s42
      %p44 = scmp.eq.s32.totalorder %s43, 0
      %s46 = sadd.s32 %s45, 1
      %s47 = scalar_select %p44, %s45, %s46
      %p50 = pneg %p44
      %p51 = scmp.eq.s32.totalorder %s23, 3
      %p52 = por %p50, %p51
      %p53 = scmp.ne.s32.totalorder %s45, %s48
      %p54 = scmp.eq.s32.totalorder %s23, 0
      %p55 = por %p53, %p54
      %p56 = scmp.ne.s32.totalorder %s45, %s48
      %p57 = scmp.eq.s32.totalorder %s28, 3
      %p58 = por %p56, %p57
      %p59 = scmp.ne.s32.totalorder %s48, %s49
      %p60 = scmp.eq.s32.totalorder %s28, 0
      %p61 = por %p59, %p60
      %p62 = scmp.ne.s32.totalorder %s48, %s49
      %p63 = scmp.eq.s32.totalorder %s29, 3
      %p64 = por %p62, %p63
      %p66 = scmp.ne.s32.totalorder %s49, %s65
      %p67 = scmp.eq.s32.totalorder %s29, 0
      %p68 = por %p66, %p67
      %s69 = ssub.s32 %s31, %s38
      %p70 = scmp.eq.s32.totalorder %s69, 0
      %s72 = sadd.s32 %s71, 1
      %s73 = scalar_select %p70, %s71, %s72
      %p76 = pneg %p70
      %p77 = scmp.eq.s32.totalorder %s23, 3
      %p78 = por %p76, %p77
      %p79 = scmp.ne.s32.totalorder %s71, %s74
      %p80 = scmp.eq.s32.totalorder %s23, 0
      %p81 = por %p79, %p80
      %p82 = scmp.ne.s32.totalorder %s71, %s74
      %p83 = scmp.eq.s32.totalorder %s28, 3
      %p84 = por %p82, %p83
      %p85 = scmp.ne.s32.totalorder %s74, %s75
      %p86 = scmp.eq.s32.totalorder %s28, 0
      %p87 = por %p85, %p86
      %p88 = scmp.ne.s32.totalorder %s74, %s75
      %p89 = scmp.eq.s32.totalorder %s29, 3
      %p90 = por %p88, %p89
      %p92 = scmp.ne.s32.totalorder %s75, %s91
      %p93 = scmp.eq.s32.totalorder %s29, 0
      %p94 = por %p92, %p93
      %s95 = ssub.s32 %s31, %s38
      %p96 = scmp.eq.s32.totalorder %s95, 0
      %s98 = sadd.s32 %s97, 1
      %s99 = scalar_select %p96, %s97, %s98
      %p102 = pneg %p96
      %p103 = scmp.eq.s32.totalorder %s23, 3
      %p104 = por %p102, %p103
      %p105 = scmp.ne.s32.totalorder %s97, %s100
      %p106 = scmp.eq.s32.totalorder %s23, 0
      %p107 = por %p105, %p106
      %p108 = scmp.ne.s32.totalorder %s97, %s100
      %p109 = scmp.eq.s32.totalorder %s28, 3
      %p110 = por %p108, %p109
      %p111 = scmp.ne.s32.totalorder %s100, %s101
      %p112 = scmp.eq.s32.totalorder %s28, 0
      %p113 = por %p111, %p112
      %p114 = scmp.ne.s32.totalorder %s100, %s101
      %p115 = scmp.eq.s32.totalorder %s29, 3
      %p116 = por %p114, %p115
      %p118 = scmp.ne.s32.totalorder %s101, %s117
      %p119 = scmp.eq.s32.totalorder %s29, 0
      %p120 = por %p118, %p119
      %s121 = ssub.s32 %s31, %s38
      %p122 = scmp.eq.s32.totalorder %s121, 0
      %s124 = sadd.s32 %s123, 1
      %s125 = scalar_select %p122, %s123, %s124
      %p128 = pneg %p122
      %p129 = scmp.eq.s32.totalorder %s23, 3
      %p130 = por %p128, %p129
      %p131 = scmp.ne.s32.totalorder %s123, %s126
      %p132 = scmp.eq.s32.totalorder %s23, 0
      %p133 = por %p131, %p132
      %p134 = scmp.ne.s32.totalorder %s123, %s126
      %p135 = scmp.eq.s32.totalorder %s28, 3
      %p136 = por %p134, %p135
      %p137 = scmp.ne.s32.totalorder %s126, %s127
      %p138 = scmp.eq.s32.totalorder %s28, 0
      %p139 = por %p137, %p138
      %p140 = scmp.ne.s32.totalorder %s126, %s127
      %p141 = scmp.eq.s32.totalorder %s29, 3
      %p142 = por %p140, %p141
      %p144 = scmp.ne.s32.totalorder %s127, %s143
      %p145 = scmp.eq.s32.totalorder %s29, 0
      %p146 = por %p144, %p145
      %s148 = sadd.s32 %s147, 1
      %p151 = scmp.eq.s32.totalorder %s23, 3
      %p152 = scmp.ne.s32.totalorder %s147, %s149
      %p153 = scmp.eq.s32.totalorder %s23, 0
      %p154 = por %p152, %p153
      %p155 = scmp.ne.s32.totalorder %s147, %s149
      %p156 = scmp.eq.s32.totalorder %s28, 3
      %p157 = por %p155, %p156
      %p158 = scmp.ne.s32.totalorder %s149, %s150
      %p159 = scmp.eq.s32.totalorder %s28, 0
      %p160 = por %p158, %p159
      %p161 = scmp.ne.s32.totalorder %s149, %s150
      %p162 = scmp.eq.s32.totalorder %s29, 3
      %p163 = por %p161, %p162
      %p165 = scmp.ne.s32.totalorder %s150, %s164
      %p166 = scmp.eq.s32.totalorder %s29, 0
      %p167 = por %p165, %p166
      %s169 = sadd.s32 %s168, 1
      %p172 = scmp.eq.s32.totalorder %s23, 3
      %p173 = scmp.ne.s32.totalorder %s168, %s170
      %p174 = scmp.eq.s32.totalorder %s23, 0
      %p175 = por %p173, %p174
      %p176 = scmp.ne.s32.totalorder %s168, %s170
      %p177 = scmp.eq.s32.totalorder %s28, 3
      %p178 = por %p176, %p177
      %p179 = scmp.ne.s32.totalorder %s170, %s171
      %p180 = scmp.eq.s32.totalorder %s28, 0
      %p181 = por %p179, %p180
      %p182 = scmp.ne.s32.totalorder %s170, %s171
      %p183 = scmp.eq.s32.totalorder %s29, 3
      %p184 = por %p182, %p183
      %p186 = scmp.ne.s32.totalorder %s171, %s185
      %p187 = scmp.eq.s32.totalorder %s29, 0
      %p188 = por %p186, %p187
      %s189 = ssub.s32 %s31, %s38
      %p190 = scmp.eq.s32.totalorder %s189, 0
      %s192 = sadd.s32 %s191, 1
      %s193 = scalar_select %p190, %s191, %s192
      %p196 = pneg %p190
      %p197 = scmp.eq.s32.totalorder %s23, 3
      %p198 = por %p196, %p197
      %p199 = scmp.ne.s32.totalorder %s191, %s194
      %p200 = scmp.eq.s32.totalorder %s23, 0
      %p201 = por %p199, %p200
      %p202 = scmp.ne.s32.totalorder %s191, %s194
      %p203 = scmp.eq.s32.totalorder %s28, 3
      %p204 = por %p202, %p203
      %p205 = scmp.ne.s32.totalorder %s194, %s195
      %p206 = scmp.eq.s32.totalorder %s28, 0
      %p207 = por %p205, %p206
      %p208 = scmp.ne.s32.totalorder %s194, %s195
      %p209 = scmp.eq.s32.totalorder %s29, 3
      %p210 = por %p208, %p209
      %p212 = scmp.ne.s32.totalorder %s195, %s211
      %p213 = scmp.eq.s32.totalorder %s29, 0
      %p214 = por %p212, %p213
      %s216 = sadd.s32 %s215, 1
      %p219 = scmp.eq.s32.totalorder %s23, 3
      %p220 = scmp.ne.s32.totalorder %s215, %s217
      %p221 = scmp.eq.s32.totalorder %s23, 0
      %p222 = por %p220, %p221
      %p223 = scmp.ne.s32.totalorder %s215, %s217
      %p224 = scmp.eq.s32.totalorder %s28, 3
      %p225 = por %p223, %p224
      %p226 = scmp.ne.s32.totalorder %s217, %s218
      %p227 = scmp.eq.s32.totalorder %s28, 0
      %p228 = por %p226, %p227
      %p229 = scmp.ne.s32.totalorder %s217, %s218
      %p230 = scmp.eq.s32.totalorder %s29, 3
      %p231 = por %p229, %p230
      %p233 = scmp.ne.s32.totalorder %s218, %s232
      %p234 = scmp.eq.s32.totalorder %s29, 0
      %p235 = por %p233, %p234
      %s236 = ssub.s32 %s30, %s42
      %p237 = scmp.eq.s32.totalorder %s236, 0
      %s239 = sadd.s32 %s238, 1
      %s240 = scalar_select %p237, %s238, %s239
      %p243 = pneg %p237
      %p244 = scmp.eq.s32.totalorder %s23, 3
      %p245 = por %p243, %p244
      %p246 = scmp.ne.s32.totalorder %s238, %s241
      %p247 = scmp.eq.s32.totalorder %s23, 0
      %p248 = por %p246, %p247
      %p249 = scmp.ne.s32.totalorder %s238, %s241
      %p250 = scmp.eq.s32.totalorder %s28, 3
      %p251 = por %p249, %p250
      %p252 = scmp.ne.s32.totalorder %s241, %s242
      %p253 = scmp.eq.s32.totalorder %s28, 0
      %p254 = por %p252, %p253
      %p255 = scmp.ne.s32.totalorder %s241, %s242
      %p256 = scmp.eq.s32.totalorder %s29, 3
      %p257 = por %p255, %p256
      %p259 = scmp.ne.s32.totalorder %s242, %s258
      %p260 = scmp.eq.s32.totalorder %s29, 0
      %p261 = por %p259, %p260
      %p262 = scmp.le.s32.totalorder 1, %s23
      %p263 = scmp.lt.s32.totalorder %s23, 5
      %p264 = pnand %p262, %p263
      %p265 = pneg %p264
      // Predicated region
      $region9: #{tpu_custom_call.1} parent=5 // pred_check
        _
      $region10: #{tpu_custom_call.1} parent=5 // pred_check_branch
        %267 = sbr.rel (%p264) target = $region12
      $region11: #{tpu_custom_call.1} parent=5 // pred_region
        %s268 = ssub.s32 %s23, 1
        // Predicated region
        $region13: #{tpu_custom_call.1} parent=11 // pred_check
          %p269 = pneg %p160
        $region14: #{tpu_custom_call.1} parent=11 // pred_check_branch
          %271 = sbr.rel (%p269) target = $region16
        $region15: #{tpu_custom_call.1} parent=11 // pred_region
          _
        $region16: #{tpu_custom_call.1} parent=11 // pred_fallthru
          _
        // Predicated region
        $region17: #{tpu_custom_call.1} parent=11 // pred_check
          %p272 = pneg %p181
        $region18: #{tpu_custom_call.1} parent=11 // pred_check_branch
          %274 = sbr.rel (%p272) target = $region20
        $region19: #{tpu_custom_call.1} parent=11 // pred_region
          _
        $region20: #{tpu_custom_call.1} parent=11 // pred_fallthru
          _
        // Predicated region
        $region21: #{tpu_custom_call.1} parent=11 // pred_check
          %p275 = pneg %p228
        $region22: #{tpu_custom_call.1} parent=11 // pred_check_branch
          %277 = sbr.rel (%p275) target = $region24
        $region23: #{tpu_custom_call.1} parent=11 // pred_region
          _
        $region24: #{tpu_custom_call.1} parent=11 // pred_fallthru
          _
      $region12: #{tpu_custom_call.1} parent=5 // pred_fallthru
        _
      %p278 = scmp.lt.s32.totalorder %s23, 4
      // Predicated region
      $region25: #{tpu_custom_call.1} parent=5 // pred_check
        %p279 = pneg %p278
      $region26: #{tpu_custom_call.1} parent=5 // pred_check_branch
        %281 = sbr.rel (%p279) target = $region28
      $region27: #{tpu_custom_call.1} parent=5 // pred_region
        // Predicated region
        $region29: #{tpu_custom_call.1} parent=27 // pred_check
          %p282 = pneg %p55
        $region30: #{tpu_custom_call.1} parent=27 // pred_check_branch
          %284 = sbr.rel (%p282) target = $region32
        $region31: #{tpu_custom_call.1} parent=27 // pred_region
          %s285 = sand.u32 %s45, 1
          %s286 = scalar_lea.sflag [#allocation6], %s285
          %s287 = sand.u32 %s45, 1
          %s288 = smul.addr %s287, 8
          %s289 = scalar_lea.vmem [#allocation5], %s288
          %s291 = ssub.s32 128, 128
          %292 = vsyncadd %s286, %s291
          %s293 = smul.addr %s30, 128
          %s294 = scalar_lea.hbm %s0, %s293
          %s296 = sshll.u32 %s289, 4
          %s297 = int_to_ptr.vmem [resolvable:$true] %s296
          %299 = dma.hbm_to_vmem [thread:$0]  %s294, 128, %s297, %s286
        $region32: #{tpu_custom_call.1} parent=27 // pred_fallthru
          _
        // Predicated region
        $region33: #{tpu_custom_call.1} parent=27 // pred_check
          %p300 = pneg %p81
        $region34: #{tpu_custom_call.1} parent=27 // pred_check_branch
          %302 = sbr.rel (%p300) target = $region36
        $region35: #{tpu_custom_call.1} parent=27 // pred_region
          %s303 = sand.u32 %s23, 1
          %s304 = scalar_lea.sflag [#allocation9], %s303
          %s305 = sand.u32 %s71, 1
          %s306 = smul.addr %s305, 128
          %s307 = scalar_lea.vmem [#allocation8], %s306
          %s309 = ssub.s32 2048, 2048
          %310 = vsyncadd %s304, %s309
          %s311 = smul.addr %s31, 128
          %s312 = scalar_lea.hbm %s1, %s311
          %s313 = sshll.u32 %s307, 4
          %s314 = int_to_ptr.vmem [resolvable:$true] %s313
          %319 = dma.hbm_to_vmem [thread:$0]  %s312, 2048, %s314, %s304, 256, 128, 8
        $region36: #{tpu_custom_call.1} parent=27 // pred_fallthru
          _
        // Predicated region
        $region37: #{tpu_custom_call.1} parent=27 // pred_check
          %p320 = pneg %p107
        $region38: #{tpu_custom_call.1} parent=27 // pred_check_branch
          %322 = sbr.rel (%p320) target = $region40
        $region39: #{tpu_custom_call.1} parent=27 // pred_region
          %p323 = scmp.lt.s32.totalorder %s31, 1
          %s324 = scalar_select %p323, %s31, 1
          %s325 = scalar_lea.vmem %s2, %s324
        $region40: #{tpu_custom_call.1} parent=27 // pred_fallthru
          _
        // Predicated region
        $region41: #{tpu_custom_call.1} parent=27 // pred_check
          %p326 = pneg %p133
        $region42: #{tpu_custom_call.1} parent=27 // pred_check_branch
          %328 = sbr.rel (%p326) target = $region44
        $region43: #{tpu_custom_call.1} parent=27 // pred_region
          %p329 = scmp.lt.s32.totalorder %s31, 1
          %s330 = scalar_select %p329, %s31, 1
          %s331 = scalar_lea.vmem %s3, %s330
        $region44: #{tpu_custom_call.1} parent=27 // pred_fallthru
          _
        // Predicated region
        $region45: #{tpu_custom_call.1} parent=27 // pred_check
          %p332 = pneg %p201
        $region46: #{tpu_custom_call.1} parent=27 // pred_check_branch
          %334 = sbr.rel (%p332) target = $region48
        $region47: #{tpu_custom_call.1} parent=27 // pred_region
          %s335 = sand.u32 %s23, 1
          %s336 = scalar_lea.sflag [#allocation9], %s335
          %s337 = sand.u32 %s191, 1
          %s338 = smul.addr %s337, 128
          %s339 = scalar_lea.vmem [#allocation10], %s338
          %s340 = smul.u32 16, %s31
          %s342 = ssub.s32 2048, 2048
          %343 = vsyncadd %s336, %s342
          %s344 = smul.addr %s340, 128
          %s345 = scalar_lea.hbm %s6, %s344
          %s346 = sshll.u32 %s339, 4
          %s347 = int_to_ptr.vmem [resolvable:$true] %s346
          %352 = dma.hbm_to_vmem [thread:$0]  %s345, 2048, %s347, %s336, 128, 128, 8
        $region48: #{tpu_custom_call.1} parent=27 // pred_fallthru
          _
      $region28: #{tpu_custom_call.1} parent=5 // pred_fallthru
        _
      %p353 = scmp.le.s32.totalorder 1, %s23
      %p354 = scmp.lt.s32.totalorder %s23, 5
      %p355 = pnand %p353, %p354
      %p356 = pneg %p355
      // Predicated region
      $region49: #{tpu_custom_call.1} parent=5 // pred_check
        _
      $region50: #{tpu_custom_call.1} parent=5 // pred_check_branch
        %358 = sbr.rel (%p355) target = $region52
      $region51: #{tpu_custom_call.1} parent=5 // pred_region
        %s359 = ssub.s32 %s23, 1
        %s360 = sand.u32 %s48, 1
        %s361 = scalar_lea.sflag [#allocation6], %s360
        %s362 = sand.u32 %s48, 1
        %s363 = smul.addr %s362, 8
        %s364 = scalar_lea.vmem [#allocation5], %s363
        // Predicated region
        $region53: #{tpu_custom_call.1} parent=51 // pred_check
          %p365 = pneg %p61
        $region54: #{tpu_custom_call.1} parent=51 // pred_check_branch
          %367 = sbr.rel (%p365) target = $region56
        $region55: #{tpu_custom_call.1} parent=51 // pred_region
          %368 = dma.done %s361, 128
        $region56: #{tpu_custom_call.1} parent=51 // pred_fallthru
          _
        %s369 = sand.u32 %s28, 1
        %s370 = scalar_lea.sflag [#allocation9], %s369
        %s371 = sand.u32 %s74, 1
        %s372 = smul.addr %s371, 128
        %s373 = scalar_lea.vmem [#allocation8], %s372
        // Predicated region
        $region57: #{tpu_custom_call.1} parent=51 // pred_check
          %p374 = pneg %p87
        $region58: #{tpu_custom_call.1} parent=51 // pred_check_branch
          %376 = sbr.rel (%p374) target = $region60
        $region59: #{tpu_custom_call.1} parent=51 // pred_region
          %377 = dma.done %s370, 2048
        $region60: #{tpu_custom_call.1} parent=51 // pred_fallthru
          _
        %s378 = sand.u32 %s28, 1
        %s379 = scalar_lea.sflag [#allocation9], %s378
        %s380 = sand.u32 %s194, 1
        %s381 = smul.addr %s380, 128
        %s382 = scalar_lea.vmem [#allocation10], %s381
        // Predicated region
        $region61: #{tpu_custom_call.1} parent=51 // pred_check
          %p383 = pneg %p207
        $region62: #{tpu_custom_call.1} parent=51 // pred_check_branch
          %385 = sbr.rel (%p383) target = $region64
        $region63: #{tpu_custom_call.1} parent=51 // pred_region
          %386 = dma.done %s379, 2048
        $region64: #{tpu_custom_call.1} parent=51 // pred_fallthru
          _
        %s387 = sand.u32 %s48, 1
        %s388 = scalar_lea.sflag [#allocation6], %s387
        %s389 = sand.u32 %s48, 1
        %s390 = smul.addr %s389, 8
        %s391 = scalar_lea.vmem [#allocation5], %s390
        %p392 = pneg %p61
        %p393 = pneg %p58
        %s394 = sand.u32 %s28, 1
        %s395 = scalar_lea.sflag [#allocation9], %s394
        %s396 = sand.u32 %s74, 1
        %s397 = smul.addr %s396, 128
        %s398 = scalar_lea.vmem [#allocation8], %s397
        %p399 = pneg %p87
        %p400 = pneg %p84
        %p401 = scmp.lt.s32.totalorder %s33, 1
        %s402 = scalar_select %p401, %s33, 1
        %s403 = scalar_lea.vmem %s2, %s402
        %p404 = pneg %p113
        %p405 = pneg %p110
        %p406 = scmp.lt.s32.totalorder %s33, 1
        %s407 = scalar_select %p406, %s33, 1
        %s408 = scalar_lea.vmem %s3, %s407
        %p409 = pneg %p139
        %p410 = pneg %p136
        %p411 = pneg %p160
        %p412 = pneg %p157
        %p413 = pneg %p181
        %p414 = pneg %p178
        %s415 = sand.u32 %s28, 1
        %s416 = scalar_lea.sflag [#allocation9], %s415
        %s417 = sand.u32 %s194, 1
        %s418 = smul.addr %s417, 128
        %s419 = scalar_lea.vmem [#allocation10], %s418
        %p420 = pneg %p207
        %p421 = pneg %p204
        %p422 = pneg %p228
        %p423 = pneg %p225
        %p424 = pneg %p254
        %p425 = pneg %p251
        %s426 = sand.u32 %s241, 1
        %s427 = scalar_lea.sflag [#allocation7], %s426
        %s428 = sand.u32 %s241, 1
        %s429 = smul.addr %s428, 8
        %s430 = scalar_lea.vmem [#allocation11], %s429
        %p431 = scmp.lt.s32.totalorder %s33, 1
        %s432 = scalar_select %p431, %s33, 1
        %s433 = scalar_lea.vmem %s2, %s432
        %p434 = scmp.lt.s32.totalorder %s33, 1
        %s435 = scalar_select %p434, %s33, 1
        %s436 = scalar_lea.vmem %s3, %s435
        %s437 = smul.u32 16, %s33
        %p438 = scmp.eq.s32.totalorder %s33, 0
        // Predicated region
        $region65: #{tpu_custom_call.1} parent=51 // pred_check
          %p439 = pneg %p438
        $region66: #{tpu_custom_call.1} parent=51 // pred_check_branch
          %441 = sbr.rel (%p439) target = $region68
        $region67: #{tpu_custom_call.1} parent=51 // pred_region
          %442 = vst [vmem:[#allocation2] sm:$0xff] 0.0
          %vm443 = vcmask 7168
          %444 = vst.msk [vmem:[#allocation3] sm:$0xff] %vm443, 0.0
          %445 = vst.msk [vmem:[#allocation4] sm:$0xff] %vm443, 0.0
        $region68: #{tpu_custom_call.1} parent=51 // pred_fallthru
          _
        %v446 = vld [vmem:[%s364] sm:$0xff]
        %v447 = vld [vmem:[%s373] sm:$0xff]
        %v448 = vld [vmem:[%s373 + $0x8] sm:$0xff]
        %v449 = vld [vmem:[%s373 + $0x10] sm:$0xff]
        %v450 = vld [vmem:[%s373 + $0x18] sm:$0xff]
        %v451 = vld [vmem:[%s373 + $0x20] sm:$0xff]
        %v452 = vld [vmem:[%s373 + $0x28] sm:$0xff]
        %v453 = vld [vmem:[%s373 + $0x30] sm:$0xff]
        %v454 = vld [vmem:[%s373 + $0x38] sm:$0xff]
        %v455 = vld [vmem:[%s373 + $0x40] sm:$0xff]
        %v456 = vld [vmem:[%s373 + $0x48] sm:$0xff]
        %v457 = vld [vmem:[%s373 + $0x50] sm:$0xff]
        %v458 = vld [vmem:[%s373 + $0x58] sm:$0xff]
        %v459 = vld [vmem:[%s373 + $0x60] sm:$0xff]
        %v460 = vld [vmem:[%s373 + $0x68] sm:$0xff]
        %v461 = vld [vmem:[%s373 + $0x70] sm:$0xff]
        %v462 = vld [vmem:[%s373 + $0x78] sm:$0xff]
        %v463 = vld [vmem:[%s433] sm:$0x1]
        %v465 = vlaneseq
        %v466 = vshrl.u32 %v465, 7
        %v467 = vsub.s32 0, %v466
        %v468 = vrot.slane %v463, %v467
        %470 = vmatprep.subr.mxu0 0.0
        %471 = vmatpush1.msra.mxu0 %v447
        %472 = vmatprep.subr.mxu0 0.0
        %473 = vmatpush1.msra.mxu0 %v448
        %474 = vmatprep.subr.mxu0 0.0
        %475 = vmatpush1.msra.mxu0 %v449
        %476 = vmatprep.subr.mxu0 0.0
        %477 = vmatpush1.msra.mxu0 %v450
        %478 = vmatprep.subr.mxu0 0.0
        %479 = vmatpush1.msra.mxu0 %v451
        %480 = vmatprep.subr.mxu0 0.0
        %481 = vmatpush1.msra.mxu0 %v452
        %482 = vmatprep.subr.mxu0 0.0
        %483 = vmatpush1.msra.mxu0 %v453
        %484 = vmatprep.subr.mxu0 0.0
        %485 = vmatpush1.msra.mxu0 %v454
        %486 = vmatprep.subr.mxu0 0.0
        %487 = vmatpush1.msra.mxu0 %v455
        %488 = vmatprep.subr.mxu0 0.0
        %489 = vmatpush1.msra.mxu0 %v456
        %490 = vmatprep.subr.mxu0 0.0
        %491 = vmatpush1.msra.mxu0 %v457
        %492 = vmatprep.subr.mxu0 0.0
        %493 = vmatpush1.msra.mxu0 %v458
        %494 = vmatprep.subr.mxu0 0.0
        %495 = vmatpush1.msra.mxu0 %v459
        %496 = vmatprep.subr.mxu0 0.0
        %497 = vmatpush1.msra.mxu0 %v460
        %498 = vmatprep.subr.mxu0 0.0
        %499 = vmatpush1.msra.mxu0 %v461
        %500 = vmatprep.subr.mxu0 0.0
        %501 = vmatpush1.msra.mxu0 %v462
        %502 = vmatprep.subr.mxu0 0.0
        %503 = vmatpush1.msra.mxu0 0.0
        %504 = vmatprep.subr.mxu0 0.0
        %505 = vmatpush1.msra.mxu0 0.0
        %506 = vmatprep.subr.mxu0 0.0
        %507 = vmatpush1.msra.mxu0 0.0
        %508 = vmatprep.subr.mxu0 0.0
        %509 = vmatpush1.msra.mxu0 0.0
        %510 = vmatprep.subr.mxu0 0.0
        %511 = vmatpush1.msra.mxu0 0.0
        %512 = vmatprep.subr.mxu0 0.0
        %513 = vmatpush1.msra.mxu0 0.0
        %514 = vmatprep.subr.mxu0 0.0
        %515 = vmatpush1.msra.mxu0 0.0
        %516 = vmatprep.subr.mxu0 0.0
        %517 = vmatpush1.msra.mxu0 0.0
        %518 = vmatprep.subr.mxu0 0.0
        %519 = vmatpush1.msra.mxu0 0.0
        %520 = vmatprep.subr.mxu0 0.0
        %521 = vmatpush1.msra.mxu0 0.0
        %522 = vmatprep.subr.mxu0 0.0
        %523 = vmatpush1.msra.mxu0 0.0
        %524 = vmatprep.subr.mxu0 0.0
        %525 = vmatpush1.msra.mxu0 0.0
        %526 = vmatprep.subr.mxu0 0.0
        %527 = vmatpush1.msra.mxu0 0.0
        %528 = vmatprep.subr.mxu0 0.0
        %529 = vmatpush1.msra.mxu0 0.0
        %530 = vmatprep.subr.mxu0 0.0
        %531 = vmatpush1.msra.mxu0 0.0
        %532 = vmatprep.subr.mxu0 0.0
        %533 = vmatpush1.msra.mxu0 0.0
        %534 = vmatprep.mubr.f32.mxu0 0.0
        %535 = vmatmul.mubr.f32.gmra.mrb[0].mxu0 %v446
        %v536 = vpop.f32.mrb[0].mxu0
        %v537 = vadd.f32 %v468, %v536
        %v538 = vpop.f32.mrb[0].mxu0
        %539 = vdwg.mxu0
        %v540 = vmul.f32 %v537, 0.5
        %v541 = vmul.f32 %v537, 0.70710677
        %v542 = verf.f32.pop %v541
        %v543 = vadd.f32 %v542, 1.0
        %v544 = vmul.f32 %v540, %v543
        %v545 = vld [vmem:[#allocation3] sm:$0xff]
        %546 = vadd.xlane.f32.xlu0 %v544
        %v547 = vpop.xlane.xlu0 %546
        %v548 = vadd.f32 %v545, %v547
        %vm549 = vcmask 7168
        %550 = vst.msk [vmem:[#allocation3] sm:$0xff] %vm549, %v548
        %v551 = vld [vmem:[#allocation4] sm:$0xff]
        %v552 = vmul.f32 %v544, %v544
        %553 = vadd.xlane.f32.xlu0 %v552
        %v554 = vpop.xlane.xlu0 %553
        %v555 = vadd.f32 %v551, %v554
        %556 = vst.msk [vmem:[#allocation4] sm:$0xff] %vm549, %v555
        %v557 = vld [vmem:[%s436] sm:$0x1]
        %v559 = vlaneseq
        %v560 = vshrl.u32 %v559, 7
        %v561 = vsub.s32 0, %v560
        %v562 = vrot.slane %v557, %v561
        %v564 = vmul.f32 %v544, %v562
        %v565 = vld [vmem:[#allocation2] sm:$0xff]
        %v566 = vld [vmem:[%s382] sm:$0xff]
        %v567 = vld [vmem:[%s382 + $0x8] sm:$0xff]
        %v568 = vld [vmem:[%s382 + $0x10] sm:$0xff]
        %v569 = vld [vmem:[%s382 + $0x18] sm:$0xff]
        %v570 = vld [vmem:[%s382 + $0x20] sm:$0xff]
        %v571 = vld [vmem:[%s382 + $0x28] sm:$0xff]
        %v572 = vld [vmem:[%s382 + $0x30] sm:$0xff]
        %v573 = vld [vmem:[%s382 + $0x38] sm:$0xff]
        %v574 = vld [vmem:[%s382 + $0x40] sm:$0xff]
        %v575 = vld [vmem:[%s382 + $0x48] sm:$0xff]
        %v576 = vld [vmem:[%s382 + $0x50] sm:$0xff]
        %v577 = vld [vmem:[%s382 + $0x58] sm:$0xff]
        %v578 = vld [vmem:[%s382 + $0x60] sm:$0xff]
        %v579 = vld [vmem:[%s382 + $0x68] sm:$0xff]
        %v580 = vld [vmem:[%s382 + $0x70] sm:$0xff]
        %v581 = vld [vmem:[%s382 + $0x78] sm:$0xff]
        %582 = vmatprep.subr.mxu0 0.0
        %583 = vmatpush1.msra.mxu0 %v566
        %584 = vmatprep.subr.mxu0 0.0
        %585 = vmatpush1.msra.mxu0 %v567
        %586 = vmatprep.subr.mxu0 0.0
        %587 = vmatpush1.msra.mxu0 %v568
        %588 = vmatprep.subr.mxu0 0.0
        %589 = vmatpush1.msra.mxu0 %v569
        %590 = vmatprep.subr.mxu0 0.0
        %591 = vmatpush1.msra.mxu0 %v570
        %592 = vmatprep.subr.mxu0 0.0
        %593 = vmatpush1.msra.mxu0 %v571
        %594 = vmatprep.subr.mxu0 0.0
        %595 = vmatpush1.msra.mxu0 %v572
        %596 = vmatprep.subr.mxu0 0.0
        %597 = vmatpush1.msra.mxu0 %v573
        %598 = vmatprep.subr.mxu0 0.0
        %599 = vmatpush1.msra.mxu0 %v574
        %600 = vmatprep.subr.mxu0 0.0
        %601 = vmatpush1.msra.mxu0 %v575
        %602 = vmatprep.subr.mxu0 0.0
        %603 = vmatpush1.msra.mxu0 %v576
        %604 = vmatprep.subr.mxu0 0.0
        %605 = vmatpush1.msra.mxu0 %v577
        %606 = vmatprep.subr.mxu0 0.0
        %607 = vmatpush1.msra.mxu0 %v578
        %608 = vmatprep.subr.mxu0 0.0
        %609 = vmatpush1.msra.mxu0 %v579
        %610 = vmatprep.subr.mxu0 0.0
        %611 = vmatpush1.msra.mxu0 %v580
        %612 = vmatprep.subr.mxu0 0.0
        %613 = vmatpush1.msra.mxu0 %v581
        %614 = vmatprep.subr.mxu0 0.0
        %615 = vmatpush1.msra.mxu0 0.0
        %616 = vmatprep.subr.mxu0 0.0
        %617 = vmatpush1.msra.mxu0 0.0
        %618 = vmatprep.subr.mxu0 0.0
        %619 = vmatpush1.msra.mxu0 0.0
        %620 = vmatprep.subr.mxu0 0.0
        %621 = vmatpush1.msra.mxu0 0.0
        %622 = vmatprep.subr.mxu0 0.0
        %623 = vmatpush1.msra.mxu0 0.0
        %624 = vmatprep.subr.mxu0 0.0
        %625 = vmatpush1.msra.mxu0 0.0
        %626 = vmatprep.subr.mxu0 0.0
        %627 = vmatpush1.msra.mxu0 0.0
        %628 = vmatprep.subr.mxu0 0.0
        %629 = vmatpush1.msra.mxu0 0.0
        %630 = vmatprep.subr.mxu0 0.0
        %631 = vmatpush1.msra.mxu0 0.0
        %632 = vmatprep.subr.mxu0 0.0
        %633 = vmatpush1.msra.mxu0 0.0
        %634 = vmatprep.subr.mxu0 0.0
        %635 = vmatpush1.msra.mxu0 0.0
        %636 = vmatprep.subr.mxu0 0.0
        %637 = vmatpush1.msra.mxu0 0.0
        %638 = vmatprep.subr.mxu0 0.0
        %639 = vmatpush1.msra.mxu0 0.0
        %640 = vmatprep.subr.mxu0 0.0
        %641 = vmatpush1.msra.mxu0 0.0
        %642 = vmatprep.subr.mxu0 0.0
        %643 = vmatpush1.msra.mxu0 0.0
        %644 = vmatprep.subr.mxu0 0.0
        %645 = vmatpush1.msra.mxu0 0.0
        %646 = vmatprep.mubr.f32.mxu0 0.0
        %647 = vmatmul.mubr.f32.gmra.mrb[0].mxu0 %v564
        %v648 = vpop.f32.mrb[0].mxu0
        %v649 = vadd.f32 0.0, %v648
        %v650 = vpop.f32.mrb[0].mxu0
        %651 = vdwg.mxu0
        %v652 = vadd.f32 %v565, %v649
        %653 = vst [vmem:[#allocation2] sm:$0xff] %v652
        %p654 = scmp.eq.s32.totalorder %s33, 1
        // Predicated region
        $region69: #{tpu_custom_call.1} parent=51 // pred_check
          %p655 = pneg %p654
        $region70: #{tpu_custom_call.1} parent=51 // pred_check_branch
          %657 = sbr.rel (%p655) target = $region72
        $region71: #{tpu_custom_call.1} parent=51 // pred_region
          %v658 = vld [vmem:[%s364] sm:$0xff]
          %v659 = vld [vmem:[#allocation2] sm:$0xff]
          %v660 = vld [vmem:[%s7] sm:$0x1]
          %v661 = vld [vmem:[#allocation3] sm:$0xff]
          %v662 = vmul.f32 %v661, 0.00390625
          %v663 = vld [vmem:[#allocation4] sm:$0xff]
          %v664 = vmul.f32 %v663, 0.00390625
          %v665 = vmul.f32 %v662, %v662
          %v666 = vsub.f32 %v664, %v665
          %v667 = vadd.f32 %v666, 1e-05
          %v668 = vrsqrt.pop %v667
          %670 = vset.pattern.permute.xlu0 0
          %671 = vperm.xlu0 %670, %v668
          %v672 = vpop.permute.xlu0 %671
          %v674 = vmul.f32 %v672, %v659
          %v675 = vadd.f32 %v658, %v674
          %v676 = vmul.f32 %v662, %v668
          %v677 = vld [vmem:[%s4] sm:$0x1]
          %679 = vset.pattern.permute.xlu0 0
          %680 = vperm.xlu0 %679, %v676
          %v681 = vpop.permute.xlu0 %680
          %v684 = vlaneseq
          %v685 = vshrl.u32 %v684, 7
          %v686 = vsub.s32 0, %v685
          %v687 = vrot.slane %v677, %v686
          %v689 = vmul.f32 %v681, %v687
          %v690 = vsub.f32 %v675, %v689
          %v691 = vld [vmem:[%s5] sm:$0x1]
          %v693 = vlaneseq
          %v694 = vshrl.u32 %v693, 7
          %v695 = vsub.s32 0, %v694
          %v696 = vrot.slane %v691, %v695
          %v698 = vadd.f32 %v690, %v696
          %v700 = vlaneseq
          %v701 = vshrl.u32 %v700, 7
          %v702 = vsub.s32 0, %v701
          %v703 = vrot.slane %v660, %v702
          %v705 = vadd.f32 %v698, %v703
          %706 = vst [vmem:[%s430] sm:$0xff] %v705
        $region72: #{tpu_custom_call.1} parent=51 // pred_fallthru
          _
        %s707 = sand.u32 %s241, 1
        %s708 = scalar_lea.sflag [#allocation7], %s707
        %s709 = sand.u32 %s241, 1
        %s710 = smul.addr %s709, 8
        %s711 = scalar_lea.vmem [#allocation11], %s710
        // Predicated region
        $region73: #{tpu_custom_call.1} parent=51 // pred_check
          %p712 = pneg %p251
        $region74: #{tpu_custom_call.1} parent=51 // pred_check_branch
          %714 = sbr.rel (%p712) target = $region76
        $region75: #{tpu_custom_call.1} parent=51 // pred_region
          %s716 = ssub.s32 128, 128
          %717 = vsyncadd %s708, %s716
          %s718 = smul.addr %s32, 128
          %s719 = scalar_lea.hbm %s8, %s718
          %s721 = sshll.u32 %s711, 4
          %s722 = int_to_ptr.vmem [resolvable:$true] %s721
          %724 = dma.vmem_to_hbm [thread:$0]  %s722, 128, %s719, %s708
        $region76: #{tpu_custom_call.1} parent=51 // pred_fallthru
          _
      $region52: #{tpu_custom_call.1} parent=5 // pred_fallthru
        _
      %p725 = scmp.le.s32.totalorder 2, %s23
      // Predicated region
      $region77: #{tpu_custom_call.1} parent=5 // pred_check
        %p726 = pneg %p725
      $region78: #{tpu_custom_call.1} parent=5 // pred_check_branch
        %728 = sbr.rel (%p726) target = $region80
      $region79: #{tpu_custom_call.1} parent=5 // pred_region
        %s729 = ssub.s32 %s23, 2
        // Predicated region
        $region81: #{tpu_custom_call.1} parent=79 // pred_check
          %p730 = pneg %p257
        $region82: #{tpu_custom_call.1} parent=79 // pred_check_branch
          %732 = sbr.rel (%p730) target = $region84
        $region83: #{tpu_custom_call.1} parent=79 // pred_region
          %s733 = sand.u32 %s242, 1
          %s734 = scalar_lea.sflag [#allocation7], %s733
          %s735 = sand.u32 %s242, 1
          %s736 = smul.addr %s735, 8
          %s737 = scalar_lea.vmem [#allocation11], %s736
          %738 = dma.done %s734, 128
        $region84: #{tpu_custom_call.1} parent=79 // pred_fallthru
          _
      $region80: #{tpu_custom_call.1} parent=5 // pred_fallthru
        _
    $region6: #{tpu_custom_call.1} parent=1 // loop_footer
      %s27 = sadd.s32 1, %s23
    $region7: #{tpu_custom_call.1} parent=1 // loop_footer_branch
      %22 = sbr.rel target = $region3
    $region8: #{tpu_custom_call.1} parent=1 // loop_exit
      _
    %739 = vsyncpa [#allocation6], 1
    %s740 = scalar_lea.sflag [#allocation6], 1
    %741 = vsyncpa %s740, 1
    %742 = vsyncpa [#allocation9], 1
    %s743 = scalar_lea.sflag [#allocation9], 1
    %744 = vsyncpa %s743, 1
    %745 = vsyncpa [#allocation7], 1
    %s746 = scalar_lea.sflag [#allocation7], 1
    %747 = vsyncpa %s746, 1

</llo_original>
